<compile_context>
chip_gen: v6e
topology: v6e:2x2x1
jax: 0.10.0
libtpu: 0.0.40
codegen_flags: <defaults>
</compile_context>

<pallas_src>
import math
import functools

import jax
import jax.numpy as jnp
from jax import lax
from jax.experimental import pallas as pl
from jax.experimental.pallas import tpu as pltpu


def _choose_rows(n_tok, d_model, itemsize, target_bytes, max_rows=1024):
    """Pick rows-per-step ~target_bytes, preferring a divisor of n_tok."""
    desired = max(8, target_bytes // max(1, d_model * itemsize))
    desired = min(desired, max_rows)
    if n_tok <= desired:
        return n_tok, 0                       # single step, block == full array
    r = (desired // 8) * 8
    while r >= 8:                             # largest mult-of-8 divisor <= desired
        if n_tok % r == 0:
            return r, 0
        r -= 8
    rows = (desired // 8) * 8                 # no clean divisor: pad (rare)
    return rows, (-n_tok) % rows


def _embeddings_kernel(ids_ref, lut_hbm, o_ref, sem, *, scale, rows):
    # ids_ref: (n_total,) int32 token ids in SMEM (scalar prefetch).
    # lut_hbm: (vocab, d_model) ref in HBM (memory_space=pl.ANY).
    # o_ref:   (rows, d_model) output tile in VMEM.
    # sem:     single DMA semaphore shared by all same-sized row copies.
    base = pl.program_id(0) * rows

    def _issue(r, c):
        tok = ids_ref[base + r]
        pltpu.make_async_copy(lut_hbm.at[pl.ds(tok, 1)],
                              o_ref.at[pl.ds(r, 1)],
                              sem).start()
        return c

    lax.fori_loop(0, rows, _issue, 0)         # rows outstanding gather DMAs

    def _wait(r, c):
        pltpu.make_async_copy(lut_hbm.at[pl.ds(0, 1)],
                              o_ref.at[pl.ds(r, 1)],
                              sem).wait()
        return c

    lax.fori_loop(0, rows, _wait, 0)

    # Fused sqrt(d_model) scale, in place on the gathered tile.
    o_ref[...] = o_ref[...] * scale


def embeddings_forward(token_ids, lut, *, target_bytes_per_step=512 * 1024):
    """token_ids: int (B, S); lut: (vocab, d_model). Returns lut[ids]*sqrt(d_model)."""
    B, S = token_ids.shape
    vocab, d_model = lut.shape
    scale = float(math.sqrt(d_model))
    itemsize = jnp.dtype(lut.dtype).itemsize

    n_tok = B * S
    rows, n_pad = _choose_rows(n_tok, d_model, itemsize, target_bytes_per_step)
    n_total = n_tok + n_pad

    # Clamp ids so a bad id can never drive an out-of-bounds HBM DMA.
    flat_ids = jnp.clip(token_ids.reshape(-1).astype(jnp.int32), 0, vocab - 1)
    if n_pad:
        flat_ids = jnp.concatenate([flat_ids, jnp.zeros((n_pad,), jnp.int32)])

    grid_spec = pltpu.PrefetchScalarGridSpec(
        num_scalar_prefetch=1,
        grid=(n_total // rows,),
        in_specs=[pl.BlockSpec(memory_space=pl.ANY)],      # LUT stays in HBM
        out_specs=pl.BlockSpec((rows, d_model), lambda i, ids: (i, 0)),
        scratch_shapes=[pltpu.SemaphoreType.DMA],
    )

    kernel = functools.partial(_embeddings_kernel, scale=scale, rows=rows)

    out_flat = pl.pallas_call(
        kernel,
        out_shape=jax.ShapeDtypeStruct((n_total, d_model), lut.dtype),
        grid_spec=grid_spec,
        compiler_params=pltpu.CompilerParams(
            dimension_semantics=("parallel",)),
    )(flat_ids, lut)

    out = out_flat if n_pad == 0 else out_flat[:n_tok]
    return out.reshape(B, S, d_model)


def embeddings_reference(token_ids, lut):
    """Pure-JAX reference with identical math, for validation."""
    return lut[token_ids] * math.sqrt(lut.shape[-1])


if __name__ == "__main__":
    B, S, D, VOCAB = 2, 8, 32, 64

    key = jax.random.PRNGKey(0)
    k_ids, k_lut = jax.random.split(key)
    token_ids = jax.random.randint(k_ids, (B, S), 0, VOCAB, dtype=jnp.int32)
    lut = jax.random.normal(k_lut, (VOCAB, D), jnp.float32)

    out = embeddings_forward(token_ids, lut)
    out = jax.block_until_ready(out)

    ref = embeddings_reference(token_ids, lut)
    assert out.shape == (B, S, D)
    assert jnp.allclose(out, ref, rtol=1e-6, atol=1e-6), "mismatch vs reference"

    print("KERNEL_OK")
</pallas_src>

<mosaic_0001>
module attributes {stable_mosaic.version = 11 : i64} {
  func.func @_embeddings_kernel(%arg0: i32, %arg1: memref<16xi32, #tpu.memory_space<smem>>, %arg2: memref<64x32xf32, #tpu.memory_space<any>>, %arg3: memref<16x32xf32, #tpu.memory_space<vmem>>, %arg4: memref<!tpu.dma_semaphore, #tpu.memory_space<semaphore_mem>>) attributes {dimension_semantics = [#tpu.dimension_semantics<parallel>], iteration_bounds = array<i64: 1>, scalar_prefetch = 1 : i64, scratch_operands = 1 : i64, tpu.core_type = #tpu.core_type<tc>, window_params = [{}, {transform_indices = @transform_1, window_bounds = array<i64: 16, 32>}]} {
    %c16_i32 = arith.constant 16 : i32
    %0 = arith.muli %arg0, %c16_i32 : i32
    %c0_i32 = arith.constant 0 : i32
    %c16_i32_0 = arith.constant 16 : i32
    %1 = arith.addi %c0_i32, %c16_i32_0 : i32
    %c1_i32 = arith.constant 1 : i32
    scf.for %arg5 = %c0_i32 to %1 step %c1_i32  : i32 {
      %7 = arith.addi %0, %arg5 : i32
      %8 = arith.index_cast %7 : i32 to index
      %9 = memref.load %arg1[%8] : memref<16xi32, #tpu.memory_space<smem>>
      %c0_i32_9 = arith.constant 0 : i32
      %10 = tpu.memref_slice %arg2[%9, %c0_i32_9] : memref<64x32xf32, #tpu.memory_space<any>> -> memref<1x32xf32, #tpu.memory_space<any>>
      %c0_i32_10 = arith.constant 0 : i32
      %11 = tpu.memref_slice %arg3[%arg5, %c0_i32_10] : memref<16x32xf32, #tpu.memory_space<vmem>> -> memref<1x32xf32, #tpu.memory_space<vmem>>
      tpu.enqueue_dma source(%10 : memref<1x32xf32, #tpu.memory_space<any>>) target(%11 : memref<1x32xf32, #tpu.memory_space<vmem>>) target_semaphore(%arg4 : memref<!tpu.dma_semaphore, #tpu.memory_space<semaphore_mem>>)
    }
    %c16_i32_1 = arith.constant 16 : i32
    %c0_i32_2 = arith.constant 0 : i32
    %c16_i32_3 = arith.constant 16 : i32
    %2 = arith.addi %c0_i32_2, %c16_i32_3 : i32
    %c1_i32_4 = arith.constant 1 : i32
    scf.for %arg5 = %c0_i32_2 to %2 step %c1_i32_4  : i32 {
      %c0_i32_9 = arith.constant 0 : i32
      %c0_i32_10 = arith.constant 0 : i32
      %7 = tpu.memref_slice %arg2[%c0_i32_9, %c0_i32_10] : memref<64x32xf32, #tpu.memory_space<any>> -> memref<1x32xf32, #tpu.memory_space<any>>
      %c0_i32_11 = arith.constant 0 : i32
      %8 = tpu.memref_slice %arg3[%arg5, %c0_i32_11] : memref<16x32xf32, #tpu.memory_space<vmem>> -> memref<1x32xf32, #tpu.memory_space<vmem>>
      tpu.wait_dma2 semaphore(%arg4 : memref<!tpu.dma_semaphore, #tpu.memory_space<semaphore_mem>>) src(%7 : memref<1x32xf32, #tpu.memory_space<any>>) dst(%8 : memref<1x32xf32, #tpu.memory_space<vmem>>)
    }
    %c16_i32_5 = arith.constant 16 : i32
    %c0 = arith.constant 0 : index
    %c0_6 = arith.constant 0 : index
    %3 = vector.load %arg3[%c0, %c0_6] : memref<16x32xf32, #tpu.memory_space<vmem>>, vector<16x32xf32>
    %cst = arith.constant 5.65685415 : f32
    %4 = vector.broadcast %cst : f32 to vector<16x32xf32>
    %5 = arith.mulf %3, %4 : vector<16x32xf32>
    %c0_7 = arith.constant 0 : index
    %c0_8 = arith.constant 0 : index
    %6 = vector.load %arg3[%c0_7, %c0_8] : memref<16x32xf32, #tpu.memory_space<vmem>>, vector<16x32xf32>
    tpu.vector_store %arg3[%c0_7, %c0_8], %5 {strides = array<i32>} : memref<16x32xf32, #tpu.memory_space<vmem>>, vector<16x32xf32>,
    return
  }
  func.func @transform_1(%arg0: i32, %arg1: memref<16xi32, #tpu.memory_space<smem>>) -> (i32, i32) {
    %c0_i32 = arith.constant 0 : i32
    %c0_i32_0 = arith.constant 0 : i32
    return %arg0, %c0_i32 : i32, i32
  }
}

</mosaic_0001>

<llo_original>
// kernel: tpu_custom_call.1
$region0: #{tpu_custom_call.1}
  #allocation0 [shape = 'u32[]', space=smem, size = 0x4, offset = 0x4, fixed_abs, tag = 'smem constant byte address 0x4 - core index']
  #allocation1 [shape = 'u32[144,128]{1,0:T(1,128)}', space=vmem, size = 0x12000, scoped, tag = 'internal scratch']
  #allocation2 [shape = 's32[1]{0}', space=sflag, size = 0x4, scoped, tag = 'scratch operand']
  #allocation3 [shape = 's32[1]{0}', space=sflag, size = 0x4, scoped, tag = 'scoped memory for tpu_custom_call.1']
  #allocation4 [shape = 'u8[512]{0}', space=smem, size = 0x200, scoped, tag = 'prefetched SMEM operand 0']
  #allocation7 [shape = 's32[]', space=sflag, size = 0x4, offset = 0, fixed_abs, tag = 'sflag constant byte address 0x0 - dummy sync flag']
  %s0 = inlined_call_operand.vmem [shape: s32[16], index: 0, kind: input, shape index: {}]
  %s1 = inlined_call_operand.vmem [shape: f32[64,32], index: 1, kind: input, shape index: {}]
  %s2 = inlined_call_operand.hbm [shape: f32[16,32], index: 2, kind: output, shape index: {}]
  %s3 = sld [smem:[#allocation0]]
  $region54: #{tpu_custom_call.1} parent=0
    _
  %s5 = ssub.s32 1, %s3
  %s6 = scalar_select 0, %s5, %s3
  %s7 = sshll.u32 %s0, 4
  %s8 = int_to_ptr.vmem [resolvable:$true] %s7
  %10 = dma.vmem_to_smem %s8, 16, [#allocation4], [#allocation3]
  %11 = dma.done [#allocation3], 16
  %12 = sfence
  $region1: #{tpu_custom_call.1} parent=0
    #allocation5 [shape = 'u8[8192]{0}', space=vmem, size = 0x2000, scoped, tag = 'output window, operand 0, single buffered']
    #allocation6 [shape = 's32[1]{0}', space=sflag, size = 0x4, scoped, tag = 'scoped memory for tpu_custom_call.1']
    %13 = vsyncpa [#allocation6], 0
    %s14 = smul.u32 0, 16
    loop: start=0, step=1, limit=16
    $region2: #{tpu_custom_call.1} parent=1 // loop_pre_header
      _
    $region3: #{tpu_custom_call.1} parent=1 // loop_header
      %s16 = sphi 0, %s20
      %p17 = scmp.ge.s32.totalorder %s16, 16
    $region4: #{tpu_custom_call.1} parent=1 // loop_header_branch
      %19 = sbr.rel (%p17) target = $region8
    $region5: #{tpu_custom_call.1} parent=1 // loop_body
      %s21 = sadd.s32 %s14, %s16
      %s22 = sld [smem:[#allocation4 + %s21]]
      %s23 = scalar_lea.vmem %s1, %s22
      %s24 = scalar_lea.vmem [#allocation5], %s16
      %p26 = scmp.lt.u32.totalorder 1, 8
      %p27 = pneg %p26
      // Predicated region
      $region9: #{tpu_custom_call.1} parent=5 // pred_check
        _
      $region10: #{tpu_custom_call.1} parent=5 // pred_check_branch
        %29 = sbr.rel (%p26) target = $region12
      $region11: #{tpu_custom_call.1} parent=5 // pred_region
        %s45 = sand.u32 1, 7
        %p46 = scmp.eq.s32.totalorder %s45, 0
        %p47 = pneg %p46
        // Predicated region
        $region24: #{tpu_custom_call.1} parent=11 // pred_check
          _
        $region25: #{tpu_custom_call.1} parent=11 // pred_check_branch
          %49 = sbr.rel (%p46) target = $region27
        $region26: #{tpu_custom_call.1} parent=11 // pred_region
          %s50 = sand.u32 1, 7
          %s51 = ssub.s32 1, %s50
          %s52 = scalar_lea.vmem %s23, %s51
          %s53 = ssub.s32 1, %s50
          %s54 = scalar_lea.vmem %s24, %s53 [#allocation5]
          %s55 = sshll.u32 1, %s50
          %s56 = ssub.s32 %s55, 1
          loop: start=0, step=1, limit=1
          $region28: #{tpu_custom_call.1} parent=26 // loop_pre_header
            _
          $region29: #{tpu_custom_call.1} parent=26 // loop_header
            %s58 = sphi 0, %s62
            %p59 = scmp.ge.s32.totalorder %s58, 1
            %s63 = sphi %s52, %s52
            %s64 = sphi %s54, %s54
          $region30: #{tpu_custom_call.1} parent=26 // loop_header_branch
            %61 = sbr.rel (%p59) target = $region34
          $region31: #{tpu_custom_call.1} parent=26 // loop_body
            %v65 = vld [vmem:[%s63] sm:%s56]
            %66 = vst [vmem:[%s64] sm:%s56] %v65
          $region32: #{tpu_custom_call.1} parent=26 // loop_footer
            %s62 = sadd.s32 1, %s58
          $region33: #{tpu_custom_call.1} parent=26 // loop_footer_branch
            %57 = sbr.rel target = $region29
          $region34: #{tpu_custom_call.1} parent=26 // loop_exit
            _
        $region27: #{tpu_custom_call.1} parent=11 // pred_fallthru
          _
      $region12: #{tpu_custom_call.1} parent=5 // pred_fallthru
        _
      // Predicated region
      $region13: #{tpu_custom_call.1} parent=5 // pred_check
        %p30 = pneg %p26
      $region14: #{tpu_custom_call.1} parent=5 // pred_check_branch
        %32 = sbr.rel (%p30) target = $region16
      $region15: #{tpu_custom_call.1} parent=5 // pred_region
        %s33 = sshll.u32 1, 1
        %s34 = ssub.s32 %s33, 1
        loop: start=0, step=1, limit=1
        $region17: #{tpu_custom_call.1} parent=15 // loop_pre_header
          _
        $region18: #{tpu_custom_call.1} parent=15 // loop_header
          %s36 = sphi 0, %s40
          %p37 = scmp.ge.s32.totalorder %s36, 1
          %s41 = sphi %s23, %s23
          %s42 = sphi %s24, %s24
        $region19: #{tpu_custom_call.1} parent=15 // loop_header_branch
          %39 = sbr.rel (%p37) target = $region23
        $region20: #{tpu_custom_call.1} parent=15 // loop_body
          %v43 = vld [vmem:[%s41] sm:%s34]
          %44 = vst [vmem:[%s42] sm:%s34] %v43
        $region21: #{tpu_custom_call.1} parent=15 // loop_footer
          %s40 = sadd.s32 1, %s36
        $region22: #{tpu_custom_call.1} parent=15 // loop_footer_branch
          %35 = sbr.rel target = $region18
        $region23: #{tpu_custom_call.1} parent=15 // loop_exit
          _
      $region16: #{tpu_custom_call.1} parent=5 // pred_fallthru
        _
      // Predicated region
      $region35: #{tpu_custom_call.1} parent=5 // pred_check
        _
      $region36: #{tpu_custom_call.1} parent=5 // pred_check_branch
        %69 = sbr.rel (0) target = $region38
      $region37: #{tpu_custom_call.1} parent=5 // pred_region
        %70 = vsyncadd [#allocation2], 16
      $region38: #{tpu_custom_call.1} parent=5 // pred_fallthru
        _
    $region6: #{tpu_custom_call.1} parent=1 // loop_footer
      %s20 = sadd.s32 1, %s16
    $region7: #{tpu_custom_call.1} parent=1 // loop_footer_branch
      %15 = sbr.rel target = $region3
    $region8: #{tpu_custom_call.1} parent=1 // loop_exit
      _
    loop: start=0, step=1, limit=16
    $region39: #{tpu_custom_call.1} parent=1 // loop_pre_header
      _
    $region40: #{tpu_custom_call.1} parent=1 // loop_header
      %s72 = sphi 0, %s76
      %p73 = scmp.ge.s32.totalorder %s72, 16
    $region41: #{tpu_custom_call.1} parent=1 // loop_header_branch
      %75 = sbr.rel (%p73) target = $region45
    $region42: #{tpu_custom_call.1} parent=1 // loop_body
      %s77 = smul.u32 1, 1
      %s78 = sshll.u32 %s77, 4
      %79 = dma.done [#allocation2], %s78
    $region43: #{tpu_custom_call.1} parent=1 // loop_footer
      %s76 = sadd.s32 1, %s72
    $region44: #{tpu_custom_call.1} parent=1 // loop_footer_branch
      %71 = sbr.rel target = $region40
    $region45: #{tpu_custom_call.1} parent=1 // loop_exit
      _
    %v80 = vld [vmem:[#allocation5] sm:$0xff]
    %v81 = vld [vmem:[#allocation5 + $0x8] sm:$0xff]
    %v82 = vmul.f32 %v80, 5.656854
    %v83 = vmul.f32 %v81, 5.656854
    %vm84 = vcmask 261120
    %85 = vst.msk [vmem:[#allocation5] sm:$0xff] %vm84, %v82
    %86 = vst.msk [vmem:[#allocation5 + $0x8] sm:$0xff] %vm84, %v83
    // Predicated region
    $region46: #{tpu_custom_call.1} parent=1 // pred_check
      _
    $region47: #{tpu_custom_call.1} parent=1 // pred_check_branch
      %88 = sbr.rel (0) target = $region49
    $region48: #{tpu_custom_call.1} parent=1 // pred_region
      %s90 = ssub.s32 256, 256
      %91 = vsyncadd [#allocation6], %s90
      %s92 = sshll.u32 [#allocation5], 4
      %s93 = int_to_ptr.vmem [resolvable:$true] %s92
      %98 = dma.vmem_to_hbm [thread:$0]  %s93, 256, %s2, [#allocation6], 128, 128, 8
    $region49: #{tpu_custom_call.1} parent=1 // pred_fallthru
      _
    // Predicated region
    $region50: #{tpu_custom_call.1} parent=1 // pred_check
      _
    $region51: #{tpu_custom_call.1} parent=1 // pred_check_branch
      %100 = sbr.rel (0) target = $region53
    $region52: #{tpu_custom_call.1} parent=1 // pred_region
      %101 = dma.done [#allocation6], 256
    $region53: #{tpu_custom_call.1} parent=1 // pred_fallthru
      _
    %102 = vsyncpa [#allocation6], 1
  %103 = vsyncmov [#allocation2]
  %s104 = vpop.sfrf %103
  %p105 = scmp.eq.s32.totalorder %s104, 0
  %p106 = pneg %p105
  %108 = shalt.err (%p106)

</llo_original>
